<compile_context>
chip_gen: v7x
topology: tpu7x:2x2x1
jax: 0.10.0
libtpu: 0.0.40
codegen_flags: <defaults>
</compile_context>

<pallas_src>
from functools import partial

import jax
import jax.numpy as jnp
from jax.experimental import pallas as pl
from jax.experimental.pallas import tpu as pltpu


def _ring_kernel(x_ref, w_ref, shift_ref, cm_ref, rings_ref, o_ref,
                 *, H, W, Cin, Cout, num_rings):
    # x_ref:     (1, Cin, (H+2)*W + 2)  row-padded, flattened, +1 slack per end
    # w_ref:     (9, Cout, Cin)         BN-scaled conv taps, tap = ky*3 + kx
    # shift_ref: (Cout, 1)              fused conv bias + BN shift
    # cm_ref:    (2, 1, H*W)            [0] left-neighbor valid, [1] right valid
    # rings_ref: (num_rings, 1, H*W)    precomputed Gaussian ring masks
    # o_ref:     (1, num_rings, Cout, H*W)
    HW = H * W
    xf = x_ref[0]                       # (Cin, (H+2)*W + 2), spatial in lanes
    mask_l = cm_ref[0]                  # (1, HW)
    mask_r = cm_ref[1]                  # (1, HW)

    acc = jnp.zeros((Cout, HW), jnp.float32)
    for dy in range(3):
        for dx in range(3):
            start = dy * W + dx                          # static lane offset
            s = xf[:, start:start + HW]                  # (Cin, HW)
            if dx == 0:
                s = s * mask_l                           # col x-1 invalid at x==0
            elif dx == 2:
                s = s * mask_r                           # col x+1 invalid at x==W-1
            acc = acc + jnp.dot(w_ref[dy * 3 + dx], s,
                                preferred_element_type=jnp.float32)

    # Fused conv-bias + BatchNorm shift (scale already folded into weights),
    # then ReLU.
    feat = jnp.maximum(acc + shift_ref[...], 0.0)        # (Cout, HW)

    # Ring modulation: (num_rings, 1, HW) * (1, Cout, HW) -> one full store.
    o_ref[0] = rings_ref[...] * feat[None, :, :]


def concentric_ring_detection(x_nchw, conv_w, conv_b,
                              bn_gamma, bn_beta, bn_mean, bn_var,
                              *, num_rings=5, eps=1e-5):
    B, Cin, H, W = x_nchw.shape
    Cout = conv_w.shape[0]
    HW = H * W
    Lpad = (H + 2) * W + 2

    x = x_nchw.astype(jnp.float32)
    # Zero-pad rows (H) for the 3x3 conv, flatten spatially, add 1 element of
    # slack per side so every tap offset is a static in-bounds lane slice.
    # Column padding is handled by masks in-kernel (no W zero-columns needed).
    # TODO(synk): for large inputs fold this row-padding copy into the kernel.
    xh = jnp.pad(x, ((0, 0), (0, 0), (1, 1), (0, 0)))
    xf = jnp.pad(xh.reshape(B, Cin, (H + 2) * W), ((0, 0), (0, 0), (1, 1)))

    # Fold BatchNorm (inference mode, running stats) into the conv:
    #   relu(BN(conv(x)+b)) == relu(conv_{w*s}(x) + (b*s + beta - mean*s))
    s = (bn_gamma.astype(jnp.float32) / jnp.sqrt(bn_var.astype(jnp.float32) + eps))
    w_scaled = conv_w.astype(jnp.float32) * s[:, None, None, None]
    # (Cout, Cin, 3, 3) -> (3, 3, Cout, Cin) -> (9, Cout, Cin)
    w = jnp.transpose(w_scaled, (2, 3, 0, 1)).reshape(9, Cout, Cin)
    shift = (conv_b.astype(jnp.float32) * s + bn_beta.astype(jnp.float32)
             - bn_mean.astype(jnp.float32) * s).reshape(Cout, 1)

    # Column-validity masks for the left/right conv taps (precomputed once).
    xx_flat = jnp.tile(jnp.arange(W, dtype=jnp.float32), H)          # (HW,)
    colmask = jnp.stack([(xx_flat > 0), (xx_flat < W - 1)]
                        ).astype(jnp.float32).reshape(2, 1, HW)

    # Concentric ring Gaussian masks precomputed once (resident VMEM input).
    yy, xx = jnp.meshgrid(jnp.arange(H, dtype=jnp.float32),
                          jnp.arange(W, dtype=jnp.float32), indexing="ij")
    dist = jnp.sqrt((xx - W / 2.0) ** 2 + (yy - H / 2.0) ** 2)
    mus = jnp.arange(1, num_rings + 1, dtype=jnp.float32) * H / num_rings / 2.0
    inv_sigma2 = 1.0 / (H / num_rings / 2.0) ** 2
    rings = jnp.exp(-((dist[None] - mus[:, None, None]) ** 2) * inv_sigma2)
    rings = rings.reshape(num_rings, 1, HW).astype(jnp.float32)

    kernel = partial(_ring_kernel, H=H, W=W, Cin=Cin, Cout=Cout,
                     num_rings=num_rings)

    out = pl.pallas_call(
        kernel,
        out_shape=jax.ShapeDtypeStruct((B, num_rings, Cout, HW), jnp.float32),
        grid_spec=pltpu.PrefetchScalarGridSpec(
            num_scalar_prefetch=0,
            grid=(B,),
            in_specs=[
                pl.BlockSpec((1, Cin, Lpad), lambda b: (b, 0, 0)),
                pl.BlockSpec((9, Cout, Cin), lambda b: (0, 0, 0)),
                pl.BlockSpec((Cout, 1), lambda b: (0, 0)),
                pl.BlockSpec((2, 1, HW), lambda b: (0, 0, 0)),
                pl.BlockSpec((num_rings, 1, HW), lambda b: (0, 0, 0)),
            ],
            out_specs=pl.BlockSpec((1, num_rings, Cout, HW),
                                   lambda b: (b, 0, 0, 0)),
        ),
        compiler_params=pltpu.CompilerParams(dimension_semantics=("parallel",)),
    )(xf, w, shift, colmask, rings)

    # Free contiguous reshape: channel index = ring_i*Cout + feature_c, which
    # matches torch.cat(rings, dim=1) on NCHW.
    return out.reshape(B, num_rings * Cout, H, W)


def _reference(x_nchw, conv_w, conv_b, gamma, beta, mean, var,
               num_rings=5, eps=1e-5):
    y = jax.lax.conv_general_dilated(
        x_nchw, conv_w, window_strides=(1, 1), padding=((1, 1), (1, 1)),
        dimension_numbers=("NCHW", "OIHW", "NCHW"))
    y = y + conv_b[None, :, None, None]
    y = (y - mean[None, :, None, None]) / jnp.sqrt(var[None, :, None, None] + eps)
    y = y * gamma[None, :, None, None] + beta[None, :, None, None]
    feat = jnp.maximum(y, 0.0)
    B, C, H, W = feat.shape
    yy, xx = jnp.meshgrid(jnp.arange(H, dtype=jnp.float32),
                          jnp.arange(W, dtype=jnp.float32), indexing="ij")
    dist = jnp.sqrt((xx - W / 2.0) ** 2 + (yy - H / 2.0) ** 2)
    rings = []
    for i in range(num_rings):
        ring = jnp.exp(-(dist - (i + 1) * H / num_rings / 2.0) ** 2
                       / (H / num_rings / 2.0) ** 2)
        rings.append(feat * ring[None, None])
    return jnp.concatenate(rings, axis=1)


if __name__ == "__main__":
    B, Cin, H, W = 2, 4, 16, 16
    Cout, num_rings = 8, 5

    key = jax.random.PRNGKey(0)
    kx, kw, kb, kg, kbe, km, kv = jax.random.split(key, 7)

    x = jax.random.normal(kx, (B, Cin, H, W), jnp.float32)
    conv_w = jax.random.normal(kw, (Cout, Cin, 3, 3), jnp.float32) * 0.1
    conv_b = jax.random.normal(kb, (Cout,), jnp.float32) * 0.1
    bn_gamma = 1.0 + 0.1 * jax.random.normal(kg, (Cout,), jnp.float32)
    bn_beta = 0.1 * jax.random.normal(kbe, (Cout,), jnp.float32)
    bn_mean = 0.1 * jax.random.normal(km, (Cout,), jnp.float32)
    bn_var = 0.5 + jax.random.uniform(kv, (Cout,), jnp.float32)

    out = concentric_ring_detection(x, conv_w, conv_b,
                                    bn_gamma, bn_beta, bn_mean, bn_var,
                                    num_rings=num_rings)
    out = jax.block_until_ready(out)

    ref = _reference(x, conv_w, conv_b, bn_gamma, bn_beta, bn_mean, bn_var,
                     num_rings=num_rings)
    assert out.shape == (B, num_rings * Cout, H, W), out.shape
    err = float(jnp.max(jnp.abs(out - ref)))
    assert err < 1e-4, err

    print("KERNEL_OK")
</pallas_src>

<mosaic_0001>
module attributes {stable_mosaic.version = 11 : i64} {
  func.func @_ring_kernel(%arg0: i32, %arg1: memref<1x4x290xf32, #tpu.memory_space<vmem>>, %arg2: memref<9x8x4xf32, #tpu.memory_space<vmem>>, %arg3: memref<8x1xf32, #tpu.memory_space<vmem>>, %arg4: memref<2x1x256xf32, #tpu.memory_space<vmem>>, %arg5: memref<5x1x256xf32, #tpu.memory_space<vmem>>, %arg6: memref<1x5x8x256xf32, #tpu.memory_space<vmem>>) attributes {dimension_semantics = [#tpu.dimension_semantics<parallel>], iteration_bounds = array<i64: 2>, scalar_prefetch = 0 : i64, scratch_operands = 0 : i64, tpu.core_type = #tpu.core_type<tc>, window_params = [{transform_indices = @transform_0, window_bounds = array<i64: 1, 4, 290>}, {pipeline_mode = #tpu.pipeline_mode<synchronous>, transform_indices = @transform_1, window_bounds = array<i64: 9, 8, 4>}, {pipeline_mode = #tpu.pipeline_mode<synchronous>, transform_indices = @transform_2, window_bounds = array<i64: 8, 1>}, {pipeline_mode = #tpu.pipeline_mode<synchronous>, transform_indices = @transform_3, window_bounds = array<i64: 2, 1, 256>}, {pipeline_mode = #tpu.pipeline_mode<synchronous>, transform_indices = @transform_4, window_bounds = array<i64: 5, 1, 256>}, {transform_indices = @transform_5, window_bounds = array<i64: 1, 5, 8, 256>}]} {
    %c0 = arith.constant 0 : index
    %c0_0 = arith.constant 0 : index
    %c0_1 = arith.constant 0 : index
    %0 = vector.load %arg1[%c0, %c0_0, %c0_1] : memref<1x4x290xf32, #tpu.memory_space<vmem>>, vector<1x4x290xf32>
    %1 = vector.shape_cast %0 : vector<1x4x290xf32> to vector<4x290xf32>
    %c0_2 = arith.constant 0 : index
    %c0_3 = arith.constant 0 : index
    %c0_4 = arith.constant 0 : index
    %2 = vector.load %arg4[%c0_2, %c0_3, %c0_4] : memref<2x1x256xf32, #tpu.memory_space<vmem>>, vector<1x1x256xf32>
    %3 = vector.shape_cast %2 : vector<1x1x256xf32> to vector<1x256xf32>
    %c1 = arith.constant 1 : index
    %c0_5 = arith.constant 0 : index
    %c0_6 = arith.constant 0 : index
    %4 = vector.load %arg4[%c1, %c0_5, %c0_6] : memref<2x1x256xf32, #tpu.memory_space<vmem>>, vector<1x1x256xf32>
    %5 = vector.shape_cast %4 : vector<1x1x256xf32> to vector<1x256xf32>
    %cst = arith.constant 0.000000e+00 : f32
    %6 = vector.broadcast %cst : f32 to vector<8x256xf32>
    %7 = vector.extract_strided_slice %1 {offsets = [0, 0], sizes = [4, 256], strides = [1, 1]} : vector<4x290xf32> to vector<4x256xf32>
    %8 = vector.broadcast %3 : vector<1x256xf32> to vector<4x256xf32>
    %9 = arith.mulf %7, %8 : vector<4x256xf32>
    %c0_7 = arith.constant 0 : index
    %c0_8 = arith.constant 0 : index
    %c0_9 = arith.constant 0 : index
    %10 = vector.load %arg2[%c0_7, %c0_8, %c0_9] : memref<9x8x4xf32, #tpu.memory_space<vmem>>, vector<1x8x4xf32>
    %11 = vector.shape_cast %10 : vector<1x8x4xf32> to vector<8x4xf32>
    %cst_10 = arith.constant dense<0.000000e+00> : vector<8x256xf32>
    %12 = tpu.matmul %11, %9, %cst_10 {dimension_numbers = #tpu.dot_dimension_numbers<[1], [0], [0], [1], [0, 0, 1, 1], [], []>} : vector<8x4xf32>, vector<4x256xf32>, vector<8x256xf32> -> vector<8x256xf32>
    %13 = arith.addf %6, %12 : vector<8x256xf32>
    %14 = vector.extract_strided_slice %1 {offsets = [0, 1], sizes = [4, 256], strides = [1, 1]} : vector<4x290xf32> to vector<4x256xf32>
    %c1_11 = arith.constant 1 : index
    %c0_12 = arith.constant 0 : index
    %c0_13 = arith.constant 0 : index
    %15 = vector.load %arg2[%c1_11, %c0_12, %c0_13] : memref<9x8x4xf32, #tpu.memory_space<vmem>>, vector<1x8x4xf32>
    %16 = vector.shape_cast %15 : vector<1x8x4xf32> to vector<8x4xf32>
    %cst_14 = arith.constant dense<0.000000e+00> : vector<8x256xf32>
    %17 = tpu.matmul %16, %14, %cst_14 {dimension_numbers = #tpu.dot_dimension_numbers<[1], [0], [0], [1], [0, 0, 1, 1], [], []>} : vector<8x4xf32>, vector<4x256xf32>, vector<8x256xf32> -> vector<8x256xf32>
    %18 = arith.addf %13, %17 : vector<8x256xf32>
    %19 = vector.extract_strided_slice %1 {offsets = [0, 2], sizes = [4, 256], strides = [1, 1]} : vector<4x290xf32> to vector<4x256xf32>
    %20 = vector.broadcast %5 : vector<1x256xf32> to vector<4x256xf32>
    %21 = arith.mulf %19, %20 : vector<4x256xf32>
    %c2 = arith.constant 2 : index
    %c0_15 = arith.constant 0 : index
    %c0_16 = arith.constant 0 : index
    %22 = vector.load %arg2[%c2, %c0_15, %c0_16] : memref<9x8x4xf32, #tpu.memory_space<vmem>>, vector<1x8x4xf32>
    %23 = vector.shape_cast %22 : vector<1x8x4xf32> to vector<8x4xf32>
    %cst_17 = arith.constant dense<0.000000e+00> : vector<8x256xf32>
    %24 = tpu.matmul %23, %21, %cst_17 {dimension_numbers = #tpu.dot_dimension_numbers<[1], [0], [0], [1], [0, 0, 1, 1], [], []>} : vector<8x4xf32>, vector<4x256xf32>, vector<8x256xf32> -> vector<8x256xf32>
    %25 = arith.addf %18, %24 : vector<8x256xf32>
    %26 = vector.extract_strided_slice %1 {offsets = [0, 16], sizes = [4, 256], strides = [1, 1]} : vector<4x290xf32> to vector<4x256xf32>
    %27 = vector.broadcast %3 : vector<1x256xf32> to vector<4x256xf32>
    %28 = arith.mulf %26, %27 : vector<4x256xf32>
    %c3 = arith.constant 3 : index
    %c0_18 = arith.constant 0 : index
    %c0_19 = arith.constant 0 : index
    %29 = vector.load %arg2[%c3, %c0_18, %c0_19] : memref<9x8x4xf32, #tpu.memory_space<vmem>>, vector<1x8x4xf32>
    %30 = vector.shape_cast %29 : vector<1x8x4xf32> to vector<8x4xf32>
    %cst_20 = arith.constant dense<0.000000e+00> : vector<8x256xf32>
    %31 = tpu.matmul %30, %28, %cst_20 {dimension_numbers = #tpu.dot_dimension_numbers<[1], [0], [0], [1], [0, 0, 1, 1], [], []>} : vector<8x4xf32>, vector<4x256xf32>, vector<8x256xf32> -> vector<8x256xf32>
    %32 = arith.addf %25, %31 : vector<8x256xf32>
    %33 = vector.extract_strided_slice %1 {offsets = [0, 17], sizes = [4, 256], strides = [1, 1]} : vector<4x290xf32> to vector<4x256xf32>
    %c4 = arith.constant 4 : index
    %c0_21 = arith.constant 0 : index
    %c0_22 = arith.constant 0 : index
    %34 = vector.load %arg2[%c4, %c0_21, %c0_22] : memref<9x8x4xf32, #tpu.memory_space<vmem>>, vector<1x8x4xf32>
    %35 = vector.shape_cast %34 : vector<1x8x4xf32> to vector<8x4xf32>
    %cst_23 = arith.constant dense<0.000000e+00> : vector<8x256xf32>
    %36 = tpu.matmul %35, %33, %cst_23 {dimension_numbers = #tpu.dot_dimension_numbers<[1], [0], [0], [1], [0, 0, 1, 1], [], []>} : vector<8x4xf32>, vector<4x256xf32>, vector<8x256xf32> -> vector<8x256xf32>
    %37 = arith.addf %32, %36 : vector<8x256xf32>
    %38 = vector.extract_strided_slice %1 {offsets = [0, 18], sizes = [4, 256], strides = [1, 1]} : vector<4x290xf32> to vector<4x256xf32>
    %39 = vector.broadcast %5 : vector<1x256xf32> to vector<4x256xf32>
    %40 = arith.mulf %38, %39 : vector<4x256xf32>
    %c5 = arith.constant 5 : index
    %c0_24 = arith.constant 0 : index
    %c0_25 = arith.constant 0 : index
    %41 = vector.load %arg2[%c5, %c0_24, %c0_25] : memref<9x8x4xf32, #tpu.memory_space<vmem>>, vector<1x8x4xf32>
    %42 = vector.shape_cast %41 : vector<1x8x4xf32> to vector<8x4xf32>
    %cst_26 = arith.constant dense<0.000000e+00> : vector<8x256xf32>
    %43 = tpu.matmul %42, %40, %cst_26 {dimension_numbers = #tpu.dot_dimension_numbers<[1], [0], [0], [1], [0, 0, 1, 1], [], []>} : vector<8x4xf32>, vector<4x256xf32>, vector<8x256xf32> -> vector<8x256xf32>
    %44 = arith.addf %37, %43 : vector<8x256xf32>
    %45 = vector.extract_strided_slice %1 {offsets = [0, 32], sizes = [4, 256], strides = [1, 1]} : vector<4x290xf32> to vector<4x256xf32>
    %46 = vector.broadcast %3 : vector<1x256xf32> to vector<4x256xf32>
    %47 = arith.mulf %45, %46 : vector<4x256xf32>
    %c6 = arith.constant 6 : index
    %c0_27 = arith.constant 0 : index
    %c0_28 = arith.constant 0 : index
    %48 = vector.load %arg2[%c6, %c0_27, %c0_28] : memref<9x8x4xf32, #tpu.memory_space<vmem>>, vector<1x8x4xf32>
    %49 = vector.shape_cast %48 : vector<1x8x4xf32> to vector<8x4xf32>
    %cst_29 = arith.constant dense<0.000000e+00> : vector<8x256xf32>
    %50 = tpu.matmul %49, %47, %cst_29 {dimension_numbers = #tpu.dot_dimension_numbers<[1], [0], [0], [1], [0, 0, 1, 1], [], []>} : vector<8x4xf32>, vector<4x256xf32>, vector<8x256xf32> -> vector<8x256xf32>
    %51 = arith.addf %44, %50 : vector<8x256xf32>
    %52 = vector.extract_strided_slice %1 {offsets = [0, 33], sizes = [4, 256], strides = [1, 1]} : vector<4x290xf32> to vector<4x256xf32>
    %c7 = arith.constant 7 : index
    %c0_30 = arith.constant 0 : index
    %c0_31 = arith.constant 0 : index
    %53 = vector.load %arg2[%c7, %c0_30, %c0_31] : memref<9x8x4xf32, #tpu.memory_space<vmem>>, vector<1x8x4xf32>
    %54 = vector.shape_cast %53 : vector<1x8x4xf32> to vector<8x4xf32>
    %cst_32 = arith.constant dense<0.000000e+00> : vector<8x256xf32>
    %55 = tpu.matmul %54, %52, %cst_32 {dimension_numbers = #tpu.dot_dimension_numbers<[1], [0], [0], [1], [0, 0, 1, 1], [], []>} : vector<8x4xf32>, vector<4x256xf32>, vector<8x256xf32> -> vector<8x256xf32>
    %56 = arith.addf %51, %55 : vector<8x256xf32>
    %57 = vector.extract_strided_slice %1 {offsets = [0, 34], sizes = [4, 256], strides = [1, 1]} : vector<4x290xf32> to vector<4x256xf32>
    %58 = vector.broadcast %5 : vector<1x256xf32> to vector<4x256xf32>
    %59 = arith.mulf %57, %58 : vector<4x256xf32>
    %c8 = arith.constant 8 : index
    %c0_33 = arith.constant 0 : index
    %c0_34 = arith.constant 0 : index
    %60 = vector.load %arg2[%c8, %c0_33, %c0_34] : memref<9x8x4xf32, #tpu.memory_space<vmem>>, vector<1x8x4xf32>
    %61 = vector.shape_cast %60 : vector<1x8x4xf32> to vector<8x4xf32>
    %cst_35 = arith.constant dense<0.000000e+00> : vector<8x256xf32>
    %62 = tpu.matmul %61, %59, %cst_35 {dimension_numbers = #tpu.dot_dimension_numbers<[1], [0], [0], [1], [0, 0, 1, 1], [], []>} : vector<8x4xf32>, vector<4x256xf32>, vector<8x256xf32> -> vector<8x256xf32>
    %63 = arith.addf %56, %62 : vector<8x256xf32>
    %c0_36 = arith.constant 0 : index
    %c0_37 = arith.constant 0 : index
    %64 = vector.load %arg3[%c0_36, %c0_37] : memref<8x1xf32, #tpu.memory_space<vmem>>, vector<8x1xf32>
    %65 = vector.broadcast %64 : vector<8x1xf32> to vector<8x256xf32>
    %66 = arith.addf %63, %65 : vector<8x256xf32>
    %cst_38 = arith.constant 0.000000e+00 : f32
    %67 = vector.broadcast %cst_38 : f32 to vector<8x256xf32>
    %68 = arith.maximumf %66, %67 : vector<8x256xf32>
    %c0_39 = arith.constant 0 : index
    %c0_40 = arith.constant 0 : index
    %c0_41 = arith.constant 0 : index
    %69 = vector.load %arg5[%c0_39, %c0_40, %c0_41] : memref<5x1x256xf32, #tpu.memory_space<vmem>>, vector<5x1x256xf32>
    %70 = vector.shape_cast %68 : vector<8x256xf32> to vector<1x8x256xf32>
    %71 = vector.broadcast %69 : vector<5x1x256xf32> to vector<5x8x256xf32>
    %72 = vector.broadcast %70 : vector<1x8x256xf32> to vector<5x8x256xf32>
    %73 = arith.mulf %71, %72 : vector<5x8x256xf32>
    %c0_42 = arith.constant 0 : index
    %c0_43 = arith.constant 0 : index
    %c0_44 = arith.constant 0 : index
    %c0_45 = arith.constant 0 : index
    %74 = vector.load %arg6[%c0_42, %c0_43, %c0_44, %c0_45] : memref<1x5x8x256xf32, #tpu.memory_space<vmem>>, vector<1x5x8x256xf32>
    %75 = vector.shape_cast %74 : vector<1x5x8x256xf32> to vector<5x8x256xf32>
    %76 = vector.shape_cast %73 : vector<5x8x256xf32> to vector<1x5x8x256xf32>
    tpu.vector_store %arg6[%c0_42, %c0_43, %c0_44, %c0_45], %76 {strides = array<i32>} : memref<1x5x8x256xf32, #tpu.memory_space<vmem>>, vector<1x5x8x256xf32>,
    return
  }
  func.func @transform_0(%arg0: i32) -> (i32, i32, i32) {
    %c0_i32 = arith.constant 0 : i32
    %c0_i32_0 = arith.constant 0 : i32
    %c0_i32_1 = arith.constant 0 : i32
    return %arg0, %c0_i32, %c0_i32_0 : i32, i32, i32
  }
  func.func @transform_1(%arg0: i32) -> (i32, i32, i32) {
    %c0_i32 = arith.constant 0 : i32
    %c0_i32_0 = arith.constant 0 : i32
    %c0_i32_1 = arith.constant 0 : i32
    %c0_i32_2 = arith.constant 0 : i32
    return %c0_i32, %c0_i32_0, %c0_i32_1 : i32, i32, i32
  }
  func.func @transform_2(%arg0: i32) -> (i32, i32) {
    %c0_i32 = arith.constant 0 : i32
    %c0_i32_0 = arith.constant 0 : i32
    %c0_i32_1 = arith.constant 0 : i32
    return %c0_i32, %c0_i32_0 : i32, i32
  }
  func.func @transform_3(%arg0: i32) -> (i32, i32, i32) {
    %c0_i32 = arith.constant 0 : i32
    %c0_i32_0 = arith.constant 0 : i32
    %c0_i32_1 = arith.constant 0 : i32
    %c0_i32_2 = arith.constant 0 : i32
    return %c0_i32, %c0_i32_0, %c0_i32_1 : i32, i32, i32
  }
  func.func @transform_4(%arg0: i32) -> (i32, i32, i32) {
    %c0_i32 = arith.constant 0 : i32
    %c0_i32_0 = arith.constant 0 : i32
    %c0_i32_1 = arith.constant 0 : i32
    %c0_i32_2 = arith.constant 0 : i32
    return %c0_i32, %c0_i32_0, %c0_i32_1 : i32, i32, i32
  }
  func.func @transform_5(%arg0: i32) -> (i32, i32, i32, i32) {
    %c0_i32 = arith.constant 0 : i32
    %c0_i32_0 = arith.constant 0 : i32
    %c0_i32_1 = arith.constant 0 : i32
    %c0_i32_2 = arith.constant 0 : i32
    return %arg0, %c0_i32, %c0_i32_0, %c0_i32_1 : i32, i32, i32, i32
  }
}

</mosaic_0001>

<llo_original>
// kernel: tpu_custom_call.1
$region0: #{tpu_custom_call.1}
  #allocation0 [shape = 'u32[]', space=smem, size = 0x4, offset = 0x4, fixed_abs, tag = 'smem constant byte address 0x4 - core index']
  #allocation1 [shape = 'u32[144,128]{1,0:T(1,128)}', space=vmem, size = 0x12000, scoped, tag = 'internal scratch']
  %s0 = inlined_call_operand.vmem [shape: f32[2,4,290], index: 0, kind: input, shape index: {}]
  %s1 = inlined_call_operand.vmem [shape: f32[9,8,4], index: 1, kind: input, shape index: {}]
  %s2 = inlined_call_operand.vmem [shape: f32[8,1], index: 2, kind: input, shape index: {}]
  %s3 = inlined_call_operand.vmem [shape: f32[2,1,256], index: 3, kind: input, shape index: {}]
  %s4 = inlined_call_operand.vmem [shape: f32[5,1,256], index: 4, kind: input, shape index: {}]
  %s5 = inlined_call_operand.hbm [shape: f32[2,5,8,256], index: 5, kind: output, shape index: {}]
  %s6 = sld [smem:[#allocation0]]
  $region53: #{tpu_custom_call.1} parent=0
    _
  %s8 = ssub.s32 1, %s6
  %s9 = scalar_select 0, %s8, %s6
  $region1: #{tpu_custom_call.1} parent=0
    #allocation2 [shape = 'u8[81920]{0}', space=vmem, size = 0x14000, scoped, tag = 'output window, operand 0']
    #allocation3 [shape = 's32[2]{0}', space=sflag, size = 0x8, scoped, tag = 'scoped memory for tpu_custom_call.1']
    %10 = vsyncpa [#allocation3], 0
    %s11 = scalar_lea.sflag [#allocation3], 1
    %12 = vsyncpa %s11, 0
    loop: start=0, step=1, limit=4
    $region2: #{tpu_custom_call.1} parent=1 // loop_pre_header
      _
    $region3: #{tpu_custom_call.1} parent=1 // loop_header
      %s14 = sphi 0, %s18
      %p15 = scmp.ge.s32.totalorder %s14, 4
      %s24 = sphi 0, %s26
      %s27 = sphi 0, %s24
      %s28 = sphi 0, %s27
      %s44 = sphi 0, %s28
      %s48 = sphi 0, %s48
      %s50 = sphi 0, %s48
      %s51 = sphi 0, %s50
      %s65 = sphi 0, %s51
      %s69 = sphi 0, %s69
      %s71 = sphi 0, %s69
      %s72 = sphi 0, %s71
      %s86 = sphi 0, %s72
      %s90 = sphi 0, %s90
      %s92 = sphi 0, %s90
      %s93 = sphi 0, %s92
      %s107 = sphi 0, %s93
      %s111 = sphi 0, %s111
      %s113 = sphi 0, %s111
      %s114 = sphi 0, %s113
      %s128 = sphi 0, %s114
      %s134 = sphi 0, %s136
      %s137 = sphi 0, %s134
      %s138 = sphi 0, %s137
      %s154 = sphi 0, %s138
    $region4: #{tpu_custom_call.1} parent=1 // loop_header_branch
      %17 = sbr.rel (%p15) target = $region8
    $region5: #{tpu_custom_call.1} parent=1 // loop_body
      %s19 = ssub.s32 %s14, 1
      %s20 = ssub.s32 %s14, 2
      %s21 = sadd.s32 %s14, 1
      %s22 = ssub.s32 %s14, %s21
      %p23 = scmp.eq.s32.totalorder %s22, 0
      %s25 = sadd.s32 %s24, 1
      %s26 = scalar_select %p23, %s24, %s25
      %p29 = pneg %p23
      %p30 = scmp.eq.s32.totalorder %s14, 1
      %p31 = por %p29, %p30
      %p32 = scmp.ne.s32.totalorder %s24, %s27
      %p33 = scmp.eq.s32.totalorder %s14, 0
      %p34 = por %p32, %p33
      %p35 = scmp.ne.s32.totalorder %s24, %s27
      %p36 = scmp.eq.s32.totalorder %s19, 1
      %p37 = por %p35, %p36
      %p38 = scmp.ne.s32.totalorder %s27, %s28
      %p39 = scmp.eq.s32.totalorder %s19, 0
      %p40 = por %p38, %p39
      %p41 = scmp.ne.s32.totalorder %s27, %s28
      %p42 = scmp.eq.s32.totalorder %s20, 1
      %p43 = por %p41, %p42
      %p45 = scmp.ne.s32.totalorder %s28, %s44
      %p46 = scmp.eq.s32.totalorder %s20, 0
      %p47 = por %p45, %p46
      %s49 = sadd.s32 %s48, 1
      %p52 = scmp.eq.s32.totalorder %s14, 1
      %p53 = scmp.ne.s32.totalorder %s48, %s50
      %p54 = scmp.eq.s32.totalorder %s14, 0
      %p55 = por %p53, %p54
      %p56 = scmp.ne.s32.totalorder %s48, %s50
      %p57 = scmp.eq.s32.totalorder %s19, 1
      %p58 = por %p56, %p57
      %p59 = scmp.ne.s32.totalorder %s50, %s51
      %p60 = scmp.eq.s32.totalorder %s19, 0
      %p61 = por %p59, %p60
      %p62 = scmp.ne.s32.totalorder %s50, %s51
      %p63 = scmp.eq.s32.totalorder %s20, 1
      %p64 = por %p62, %p63
      %p66 = scmp.ne.s32.totalorder %s51, %s65
      %p67 = scmp.eq.s32.totalorder %s20, 0
      %p68 = por %p66, %p67
      %s70 = sadd.s32 %s69, 1
      %p73 = scmp.eq.s32.totalorder %s14, 1
      %p74 = scmp.ne.s32.totalorder %s69, %s71
      %p75 = scmp.eq.s32.totalorder %s14, 0
      %p76 = por %p74, %p75
      %p77 = scmp.ne.s32.totalorder %s69, %s71
      %p78 = scmp.eq.s32.totalorder %s19, 1
      %p79 = por %p77, %p78
      %p80 = scmp.ne.s32.totalorder %s71, %s72
      %p81 = scmp.eq.s32.totalorder %s19, 0
      %p82 = por %p80, %p81
      %p83 = scmp.ne.s32.totalorder %s71, %s72
      %p84 = scmp.eq.s32.totalorder %s20, 1
      %p85 = por %p83, %p84
      %p87 = scmp.ne.s32.totalorder %s72, %s86
      %p88 = scmp.eq.s32.totalorder %s20, 0
      %p89 = por %p87, %p88
      %s91 = sadd.s32 %s90, 1
      %p94 = scmp.eq.s32.totalorder %s14, 1
      %p95 = scmp.ne.s32.totalorder %s90, %s92
      %p96 = scmp.eq.s32.totalorder %s14, 0
      %p97 = por %p95, %p96
      %p98 = scmp.ne.s32.totalorder %s90, %s92
      %p99 = scmp.eq.s32.totalorder %s19, 1
      %p100 = por %p98, %p99
      %p101 = scmp.ne.s32.totalorder %s92, %s93
      %p102 = scmp.eq.s32.totalorder %s19, 0
      %p103 = por %p101, %p102
      %p104 = scmp.ne.s32.totalorder %s92, %s93
      %p105 = scmp.eq.s32.totalorder %s20, 1
      %p106 = por %p104, %p105
      %p108 = scmp.ne.s32.totalorder %s93, %s107
      %p109 = scmp.eq.s32.totalorder %s20, 0
      %p110 = por %p108, %p109
      %s112 = sadd.s32 %s111, 1
      %p115 = scmp.eq.s32.totalorder %s14, 1
      %p116 = scmp.ne.s32.totalorder %s111, %s113
      %p117 = scmp.eq.s32.totalorder %s14, 0
      %p118 = por %p116, %p117
      %p119 = scmp.ne.s32.totalorder %s111, %s113
      %p120 = scmp.eq.s32.totalorder %s19, 1
      %p121 = por %p119, %p120
      %p122 = scmp.ne.s32.totalorder %s113, %s114
      %p123 = scmp.eq.s32.totalorder %s19, 0
      %p124 = por %p122, %p123
      %p125 = scmp.ne.s32.totalorder %s113, %s114
      %p126 = scmp.eq.s32.totalorder %s20, 1
      %p127 = por %p125, %p126
      %p129 = scmp.ne.s32.totalorder %s114, %s128
      %p130 = scmp.eq.s32.totalorder %s20, 0
      %p131 = por %p129, %p130
      %s132 = ssub.s32 %s14, %s21
      %p133 = scmp.eq.s32.totalorder %s132, 0
      %s135 = sadd.s32 %s134, 1
      %s136 = scalar_select %p133, %s134, %s135
      %p139 = pneg %p133
      %p140 = scmp.eq.s32.totalorder %s14, 1
      %p141 = por %p139, %p140
      %p142 = scmp.ne.s32.totalorder %s134, %s137
      %p143 = scmp.eq.s32.totalorder %s14, 0
      %p144 = por %p142, %p143
      %p145 = scmp.ne.s32.totalorder %s134, %s137
      %p146 = scmp.eq.s32.totalorder %s19, 1
      %p147 = por %p145, %p146
      %p148 = scmp.ne.s32.totalorder %s137, %s138
      %p149 = scmp.eq.s32.totalorder %s19, 0
      %p150 = por %p148, %p149
      %p151 = scmp.ne.s32.totalorder %s137, %s138
      %p152 = scmp.eq.s32.totalorder %s20, 1
      %p153 = por %p151, %p152
      %p155 = scmp.ne.s32.totalorder %s138, %s154
      %p156 = scmp.eq.s32.totalorder %s20, 0
      %p157 = por %p155, %p156
      %p158 = scmp.le.s32.totalorder 1, %s14
      %p159 = scmp.lt.s32.totalorder %s14, 3
      %p160 = pnand %p158, %p159
      %p161 = pneg %p160
      // Predicated region
      $region9: #{tpu_custom_call.1} parent=5 // pred_check
        _
      $region10: #{tpu_custom_call.1} parent=5 // pred_check_branch
        %163 = sbr.rel (%p160) target = $region12
      $region11: #{tpu_custom_call.1} parent=5 // pred_region
        %s164 = ssub.s32 %s14, 1
        // Predicated region
        $region13: #{tpu_custom_call.1} parent=11 // pred_check
          %p165 = pneg %p61
        $region14: #{tpu_custom_call.1} parent=11 // pred_check_branch
          %167 = sbr.rel (%p165) target = $region16
        $region15: #{tpu_custom_call.1} parent=11 // pred_region
          _
        $region16: #{tpu_custom_call.1} parent=11 // pred_fallthru
          _
        // Predicated region
        $region17: #{tpu_custom_call.1} parent=11 // pred_check
          %p168 = pneg %p82
        $region18: #{tpu_custom_call.1} parent=11 // pred_check_branch
          %170 = sbr.rel (%p168) target = $region20
        $region19: #{tpu_custom_call.1} parent=11 // pred_region
          _
        $region20: #{tpu_custom_call.1} parent=11 // pred_fallthru
          _
        // Predicated region
        $region21: #{tpu_custom_call.1} parent=11 // pred_check
          %p171 = pneg %p103
        $region22: #{tpu_custom_call.1} parent=11 // pred_check_branch
          %173 = sbr.rel (%p171) target = $region24
        $region23: #{tpu_custom_call.1} parent=11 // pred_region
          _
        $region24: #{tpu_custom_call.1} parent=11 // pred_fallthru
          _
        // Predicated region
        $region25: #{tpu_custom_call.1} parent=11 // pred_check
          %p174 = pneg %p124
        $region26: #{tpu_custom_call.1} parent=11 // pred_check_branch
          %176 = sbr.rel (%p174) target = $region28
        $region27: #{tpu_custom_call.1} parent=11 // pred_region
          _
        $region28: #{tpu_custom_call.1} parent=11 // pred_fallthru
          _
      $region12: #{tpu_custom_call.1} parent=5 // pred_fallthru
        _
      %p177 = scmp.lt.s32.totalorder %s14, 2
      // Predicated region
      $region29: #{tpu_custom_call.1} parent=5 // pred_check
        %p178 = pneg %p177
      $region30: #{tpu_custom_call.1} parent=5 // pred_check_branch
        %180 = sbr.rel (%p178) target = $region32
      $region31: #{tpu_custom_call.1} parent=5 // pred_region
        // Predicated region
        $region33: #{tpu_custom_call.1} parent=31 // pred_check
          %p181 = pneg %p34
        $region34: #{tpu_custom_call.1} parent=31 // pred_check_branch
          %183 = sbr.rel (%p181) target = $region36
        $region35: #{tpu_custom_call.1} parent=31 // pred_region
          %p184 = scmp.lt.s32.totalorder %s14, 1
          %s185 = scalar_select %p184, %s14, 1
          %s186 = smul.addr %s185, 3
          %s187 = smul.addr %s186, 4
          %s188 = scalar_lea.vmem %s0, %s187
        $region36: #{tpu_custom_call.1} parent=31 // pred_fallthru
          _
      $region32: #{tpu_custom_call.1} parent=5 // pred_fallthru
        _
      %p189 = scmp.le.s32.totalorder 1, %s14
      %p190 = scmp.lt.s32.totalorder %s14, 3
      %p191 = pnand %p189, %p190
      %p192 = pneg %p191
      // Predicated region
      $region37: #{tpu_custom_call.1} parent=5 // pred_check
        _
      $region38: #{tpu_custom_call.1} parent=5 // pred_check_branch
        %194 = sbr.rel (%p191) target = $region40
      $region39: #{tpu_custom_call.1} parent=5 // pred_region
        %s195 = ssub.s32 %s14, 1
        %p196 = scmp.lt.s32.totalorder %s19, 1
        %s197 = scalar_select %p196, %s19, 1
        %s198 = smul.addr %s197, 3
        %s199 = smul.addr %s198, 4
        %s200 = scalar_lea.vmem %s0, %s199
        %p201 = pneg %p40
        %p202 = pneg %p37
        %p203 = pneg %p61
        %p204 = pneg %p58
        %p205 = pneg %p82
        %p206 = pneg %p79
        %p207 = pneg %p103
        %p208 = pneg %p100
        %p209 = pneg %p124
        %p210 = pneg %p121
        %p211 = pneg %p150
        %p212 = pneg %p147
        %s213 = sand.u32 %s137, 1
        %s214 = scalar_lea.sflag [#allocation3], %s213
        %s215 = sand.u32 %s137, 1
        %s216 = smul.addr %s215, 80
        %s217 = scalar_lea.vmem [#allocation2], %s216
        %p218 = scmp.lt.s32.totalorder %s19, 1
        %s219 = scalar_select %p218, %s19, 1
        %s220 = smul.addr %s219, 3
        %s221 = smul.addr %s220, 4
        %s222 = scalar_lea.vmem %s0, %s221
        %v223 = vld [vmem:[%s222] sm:$0xff]
        %v224 = vld [vmem:[%s222 + $0x8] sm:$0xf]
        %v225 = vld [vmem:[%s3] sm:$0x3]
        %s226 = scalar_lea.vmem %s3, 2
        %v227 = vld [vmem:[%s226] sm:$0x3]
        %v229 = vlaneseq
        %v230 = vshrl.u32 %v229, 7
        %v231 = vsub.s32 0, %v230
        %v232 = vrot.slane %v225, %v231
        %v233 = vlaneseq
        %v234 = vshrl.u32 %v233, 7
        %v235 = vsub.s32 1, %v234
        %v236 = vrot.slane %v225, %v235
        %v237 = vcombine.low %v232, %v236
        %v239 = vmul.f32 %v223, %v237
        %v240 = vld [vmem:[%s1] sm:$0xff]
        %s241 = scalar_lea.vmem %s1, 8
        %v242 = vld [vmem:[%s241] sm:$0xff]
        %v245 = vcombine.high %v223, %v223
        %246 = vrot.lane.b32.xlu0 %v223, 127
        %v247 = vpop.permute.xlu0 %246
        %248 = vrot.lane.b32.xlu0 %v245, 127
        %v249 = vpop.permute.xlu0 %248
        %250 = vrot.lane.b32.xlu0 %v224, 127
        %v251 = vpop.permute.xlu0 %250
        %vm252 = vcmask 1039360
        %v253 = vsel %vm252, %v247, %v249
        %v254 = vsel %vm252, %v249, %v251
        %vm255 = vcmask 31744
        %v257 = vsel %vm255, %v242, 0
        %vm259 = vcmask 1043456
        %v260 = vsel %vm259, %v253, 0
        %v262 = vsel %vm259, %v254, 0
        %264 = vmatprep.subr.mxu0 %v262
        %265 = vmatpush1.msra.mxu0 %v260
        %266 = vmatprep.subr.mxu0 0.0
        %267 = vmatpush1.msra.mxu0 0.0
        %268 = vmatprep.subr.mxu0 0.0
        %269 = vmatpush1.msra.mxu0 0.0
        %270 = vmatprep.subr.mxu0 0.0
        %271 = vmatpush1.msra.mxu0 0.0
        %272 = vmatprep.subr.mxu0 0.0
        %273 = vmatpush1.msra.mxu0 0.0
        %274 = vmatprep.subr.mxu0 0.0
        %275 = vmatpush1.msra.mxu0 0.0
        %276 = vmatprep.subr.mxu0 0.0
        %277 = vmatpush1.msra.mxu0 0.0
        %278 = vmatprep.subr.mxu0 0.0
        %279 = vmatpush1.msra.mxu0 0.0
        %280 = vmatprep.subr.mxu0 0.0
        %281 = vmatpush1.msra.mxu0 0.0
        %282 = vmatprep.subr.mxu0 0.0
        %283 = vmatpush1.msra.mxu0 0.0
        %284 = vmatprep.subr.mxu0 0.0
        %285 = vmatpush1.msra.mxu0 0.0
        %286 = vmatprep.subr.mxu0 0.0
        %287 = vmatpush1.msra.mxu0 0.0
        %288 = vmatprep.subr.mxu0 0.0
        %289 = vmatpush1.msra.mxu0 0.0
        %290 = vmatprep.subr.mxu0 0.0
        %291 = vmatpush1.msra.mxu0 0.0
        %292 = vmatprep.subr.mxu0 0.0
        %293 = vmatpush1.msra.mxu0 0.0
        %294 = vmatprep.subr.mxu0 0.0
        %295 = vmatpush1.msra.mxu0 0.0
        %296 = vmatprep.subr.mxu0 0.0
        %297 = vmatpush1.msra.mxu0 0.0
        %298 = vmatprep.subr.mxu0 0.0
        %299 = vmatpush1.msra.mxu0 0.0
        %300 = vmatprep.subr.mxu0 0.0
        %301 = vmatpush1.msra.mxu0 0.0
        %302 = vmatprep.subr.mxu0 0.0
        %303 = vmatpush1.msra.mxu0 0.0
        %304 = vmatprep.subr.mxu0 0.0
        %305 = vmatpush1.msra.mxu0 0.0
        %306 = vmatprep.subr.mxu0 0.0
        %307 = vmatpush1.msra.mxu0 0.0
        %308 = vmatprep.subr.mxu0 0.0
        %309 = vmatpush1.msra.mxu0 0.0
        %310 = vmatprep.subr.mxu0 0.0
        %311 = vmatpush1.msra.mxu0 0.0
        %312 = vmatprep.subr.mxu0 0.0
        %313 = vmatpush1.msra.mxu0 0.0
        %314 = vmatprep.subr.mxu0 0.0
        %315 = vmatpush1.msra.mxu0 0.0
        %316 = vmatprep.subr.mxu0 0.0
        %317 = vmatpush1.msra.mxu0 0.0
        %318 = vmatprep.subr.mxu0 0.0
        %319 = vmatpush1.msra.mxu0 0.0
        %320 = vmatprep.subr.mxu0 0.0
        %321 = vmatpush1.msra.mxu0 0.0
        %322 = vmatprep.subr.mxu0 0.0
        %323 = vmatpush1.msra.mxu0 0.0
        %324 = vmatprep.subr.mxu0 0.0
        %325 = vmatpush1.msra.mxu0 0.0
        %326 = vmatprep.subr.mxu0 0.0
        %327 = vmatpush1.msra.mxu0 0.0
        %328 = vmatprep.mubr.f32.mxu0 0.0
        %329 = vmatmul.mubr.f32.gmra.mrb[0].mxu0 %v257
        %v330 = vpop.f32.mrb[0].mxu0
        %v331 = vadd.f32 0.0, %v330
        %v332 = vpop.f32.mrb[0].mxu0
        %v333 = vadd.f32 0.0, %v332
        %334 = vdwg.mxu0
        %v336 = vcombine.high %v239, %v239
        %v338 = vsel %vm255, %v240, 0
        %v340 = vsel %vm259, %v239, 0
        %v342 = vsel %vm259, %v336, 0
        %344 = vmatprep.subr.mxu0 %v342
        %345 = vmatpush1.msra.mxu0 %v340
        %346 = vmatprep.subr.mxu0 0.0
        %347 = vmatpush1.msra.mxu0 0.0
        %348 = vmatprep.subr.mxu0 0.0
        %349 = vmatpush1.msra.mxu0 0.0
        %350 = vmatprep.subr.mxu0 0.0
        %351 = vmatpush1.msra.mxu0 0.0
        %352 = vmatprep.subr.mxu0 0.0
        %353 = vmatpush1.msra.mxu0 0.0
        %354 = vmatprep.subr.mxu0 0.0
        %355 = vmatpush1.msra.mxu0 0.0
        %356 = vmatprep.subr.mxu0 0.0
        %357 = vmatpush1.msra.mxu0 0.0
        %358 = vmatprep.subr.mxu0 0.0
        %359 = vmatpush1.msra.mxu0 0.0
        %360 = vmatprep.subr.mxu0 0.0
        %361 = vmatpush1.msra.mxu0 0.0
        %362 = vmatprep.subr.mxu0 0.0
        %363 = vmatpush1.msra.mxu0 0.0
        %364 = vmatprep.subr.mxu0 0.0
        %365 = vmatpush1.msra.mxu0 0.0
        %366 = vmatprep.subr.mxu0 0.0
        %367 = vmatpush1.msra.mxu0 0.0
        %368 = vmatprep.subr.mxu0 0.0
        %369 = vmatpush1.msra.mxu0 0.0
        %370 = vmatprep.subr.mxu0 0.0
        %371 = vmatpush1.msra.mxu0 0.0
        %372 = vmatprep.subr.mxu0 0.0
        %373 = vmatpush1.msra.mxu0 0.0
        %374 = vmatprep.subr.mxu0 0.0
        %375 = vmatpush1.msra.mxu0 0.0
        %376 = vmatprep.subr.mxu0 0.0
        %377 = vmatpush1.msra.mxu0 0.0
        %378 = vmatprep.subr.mxu0 0.0
        %379 = vmatpush1.msra.mxu0 0.0
        %380 = vmatprep.subr.mxu0 0.0
        %381 = vmatpush1.msra.mxu0 0.0
        %382 = vmatprep.subr.mxu0 0.0
        %383 = vmatpush1.msra.mxu0 0.0
        %384 = vmatprep.subr.mxu0 0.0
        %385 = vmatpush1.msra.mxu0 0.0
        %386 = vmatprep.subr.mxu0 0.0
        %387 = vmatpush1.msra.mxu0 0.0
        %388 = vmatprep.subr.mxu0 0.0
        %389 = vmatpush1.msra.mxu0 0.0
        %390 = vmatprep.subr.mxu0 0.0
        %391 = vmatpush1.msra.mxu0 0.0
        %392 = vmatprep.subr.mxu0 0.0
        %393 = vmatpush1.msra.mxu0 0.0
        %394 = vmatprep.subr.mxu0 0.0
        %395 = vmatpush1.msra.mxu0 0.0
        %396 = vmatprep.subr.mxu0 0.0
        %397 = vmatpush1.msra.mxu0 0.0
        %398 = vmatprep.subr.mxu0 0.0
        %399 = vmatpush1.msra.mxu0 0.0
        %400 = vmatprep.subr.mxu0 0.0
        %401 = vmatpush1.msra.mxu0 0.0
        %402 = vmatprep.subr.mxu0 0.0
        %403 = vmatpush1.msra.mxu0 0.0
        %404 = vmatprep.subr.mxu0 0.0
        %405 = vmatpush1.msra.mxu0 0.0
        %406 = vmatprep.subr.mxu0 0.0
        %407 = vmatpush1.msra.mxu0 0.0
        %408 = vmatprep.mubr.f32.mxu0 0.0
        %409 = vmatmul.mubr.f32.gmra.mrb[0].mxu0 %v338
        %v410 = vpop.f32.mrb[0].mxu0
        %v411 = vadd.f32 %v331, %v410
        %v412 = vpop.f32.mrb[0].mxu0
        %v413 = vadd.f32 %v333, %v412
        %414 = vdwg.mxu0
        %v416 = vlaneseq
        %v417 = vshrl.u32 %v416, 7
        %v418 = vsub.s32 0, %v417
        %v419 = vrot.slane %v227, %v418
        %v420 = vlaneseq
        %v421 = vshrl.u32 %v420, 7
        %v422 = vsub.s32 1, %v421
        %v423 = vrot.slane %v227, %v422
        %v424 = vcombine.low %v419, %v423
        %425 = vrot.lane.b32.xlu0 %v424, 2
        %v426 = vpop.permute.xlu0 %425
        %v427 = vrot.slane %v426, 4
        %vm428 = vcmask 15360
        %v429 = vsel %vm428, %v427, %v426
        %v432 = vmul.f32 %v223, %v429
        %v433 = vmul.f32 %v224, %v427
        %s434 = scalar_lea.vmem %s1, 16
        %v435 = vld [vmem:[%s434] sm:$0xff]
        %v438 = vcombine.high %v432, %v432
        %439 = vrot.lane.b32.xlu0 %v432, 126
        %v440 = vpop.permute.xlu0 %439
        %441 = vrot.lane.b32.xlu0 %v438, 126
        %v442 = vpop.permute.xlu0 %441
        %443 = vrot.lane.b32.xlu0 %v433, 126
        %v444 = vpop.permute.xlu0 %443
        %vm445 = vcmask 1031168
        %v446 = vsel %vm445, %v440, %v442
        %v447 = vsel %vm445, %v442, %v444
        %v449 = vsel %vm255, %v435, 0
        %v451 = vsel %vm259, %v446, 0
        %v453 = vsel %vm259, %v447, 0
        %455 = vmatprep.subr.mxu0 %v453
        %456 = vmatpush1.msra.mxu0 %v451
        %457 = vmatprep.subr.mxu0 0.0
        %458 = vmatpush1.msra.mxu0 0.0
        %459 = vmatprep.subr.mxu0 0.0
        %460 = vmatpush1.msra.mxu0 0.0
        %461 = vmatprep.subr.mxu0 0.0
        %462 = vmatpush1.msra.mxu0 0.0
        %463 = vmatprep.subr.mxu0 0.0
        %464 = vmatpush1.msra.mxu0 0.0
        %465 = vmatprep.subr.mxu0 0.0
        %466 = vmatpush1.msra.mxu0 0.0
        %467 = vmatprep.subr.mxu0 0.0
        %468 = vmatpush1.msra.mxu0 0.0
        %469 = vmatprep.subr.mxu0 0.0
        %470 = vmatpush1.msra.mxu0 0.0
        %471 = vmatprep.subr.mxu0 0.0
        %472 = vmatpush1.msra.mxu0 0.0
        %473 = vmatprep.subr.mxu0 0.0
        %474 = vmatpush1.msra.mxu0 0.0
        %475 = vmatprep.subr.mxu0 0.0
        %476 = vmatpush1.msra.mxu0 0.0
        %477 = vmatprep.subr.mxu0 0.0
        %478 = vmatpush1.msra.mxu0 0.0
        %479 = vmatprep.subr.mxu0 0.0
        %480 = vmatpush1.msra.mxu0 0.0
        %481 = vmatprep.subr.mxu0 0.0
        %482 = vmatpush1.msra.mxu0 0.0
        %483 = vmatprep.subr.mxu0 0.0
        %484 = vmatpush1.msra.mxu0 0.0
        %485 = vmatprep.subr.mxu0 0.0
        %486 = vmatpush1.msra.mxu0 0.0
        %487 = vmatprep.subr.mxu0 0.0
        %488 = vmatpush1.msra.mxu0 0.0
        %489 = vmatprep.subr.mxu0 0.0
        %490 = vmatpush1.msra.mxu0 0.0
        %491 = vmatprep.subr.mxu0 0.0
        %492 = vmatpush1.msra.mxu0 0.0
        %493 = vmatprep.subr.mxu0 0.0
        %494 = vmatpush1.msra.mxu0 0.0
        %495 = vmatprep.subr.mxu0 0.0
        %496 = vmatpush1.msra.mxu0 0.0
        %497 = vmatprep.subr.mxu0 0.0
        %498 = vmatpush1.msra.mxu0 0.0
        %499 = vmatprep.subr.mxu0 0.0
        %500 = vmatpush1.msra.mxu0 0.0
        %501 = vmatprep.subr.mxu0 0.0
        %502 = vmatpush1.msra.mxu0 0.0
        %503 = vmatprep.subr.mxu0 0.0
        %504 = vmatpush1.msra.mxu0 0.0
        %505 = vmatprep.subr.mxu0 0.0
        %506 = vmatpush1.msra.mxu0 0.0
        %507 = vmatprep.subr.mxu0 0.0
        %508 = vmatpush1.msra.mxu0 0.0
        %509 = vmatprep.subr.mxu0 0.0
        %510 = vmatpush1.msra.mxu0 0.0
        %511 = vmatprep.subr.mxu0 0.0
        %512 = vmatpush1.msra.mxu0 0.0
        %513 = vmatprep.subr.mxu0 0.0
        %514 = vmatpush1.msra.mxu0 0.0
        %515 = vmatprep.subr.mxu0 0.0
        %516 = vmatpush1.msra.mxu0 0.0
        %517 = vmatprep.subr.mxu0 0.0
        %518 = vmatpush1.msra.mxu0 0.0
        %519 = vmatprep.mubr.f32.mxu0 0.0
        %520 = vmatmul.mubr.f32.gmra.mrb[0].mxu0 %v449
        %v521 = vpop.f32.mrb[0].mxu0
        %v522 = vadd.f32 0.0, %v521
        %v523 = vpop.f32.mrb[0].mxu0
        %v524 = vadd.f32 0.0, %v523
        %525 = vdwg.mxu0
        %v526 = vadd.f32 %v411, %v522
        %v527 = vadd.f32 %v413, %v524
        %528 = vrot.lane.b32.xlu0 %v237, 16
        %v529 = vpop.permute.xlu0 %528
        %v530 = vrot.slane %v529, 4
        %vm531 = vcmask 130048
        %v532 = vsel %vm531, %v530, %v529
        %v535 = vmul.f32 %v223, %v532
        %v536 = vmul.f32 %v224, %v530
        %s537 = scalar_lea.vmem %s1, 24
        %v538 = vld [vmem:[%s537] sm:$0xff]
        %v541 = vcombine.high %v535, %v535
        %542 = vrot.lane.b32.xlu0 %v535, 112
        %v543 = vpop.permute.xlu0 %542
        %544 = vrot.lane.b32.xlu0 %v541, 112
        %v545 = vpop.permute.xlu0 %544
        %546 = vrot.lane.b32.xlu0 %v536, 112
        %v547 = vpop.permute.xlu0 %546
        %vm548 = vcmask 916480
        %v549 = vsel %vm548, %v543, %v545
        %v550 = vsel %vm548, %v545, %v547
        %v552 = vsel %vm255, %v538, 0
        %v554 = vsel %vm259, %v549, 0
        %v556 = vsel %vm259, %v550, 0
        %558 = vmatprep.subr.mxu0 %v556
        %559 = vmatpush1.msra.mxu0 %v554
        %560 = vmatprep.subr.mxu0 0.0
        %561 = vmatpush1.msra.mxu0 0.0
        %562 = vmatprep.subr.mxu0 0.0
        %563 = vmatpush1.msra.mxu0 0.0
        %564 = vmatprep.subr.mxu0 0.0
        %565 = vmatpush1.msra.mxu0 0.0
        %566 = vmatprep.subr.mxu0 0.0
        %567 = vmatpush1.msra.mxu0 0.0
        %568 = vmatprep.subr.mxu0 0.0
        %569 = vmatpush1.msra.mxu0 0.0
        %570 = vmatprep.subr.mxu0 0.0
        %571 = vmatpush1.msra.mxu0 0.0
        %572 = vmatprep.subr.mxu0 0.0
        %573 = vmatpush1.msra.mxu0 0.0
        %574 = vmatprep.subr.mxu0 0.0
        %575 = vmatpush1.msra.mxu0 0.0
        %576 = vmatprep.subr.mxu0 0.0
        %577 = vmatpush1.msra.mxu0 0.0
        %578 = vmatprep.subr.mxu0 0.0
        %579 = vmatpush1.msra.mxu0 0.0
        %580 = vmatprep.subr.mxu0 0.0
        %581 = vmatpush1.msra.mxu0 0.0
        %582 = vmatprep.subr.mxu0 0.0
        %583 = vmatpush1.msra.mxu0 0.0
        %584 = vmatprep.subr.mxu0 0.0
        %585 = vmatpush1.msra.mxu0 0.0
        %586 = vmatprep.subr.mxu0 0.0
        %587 = vmatpush1.msra.mxu0 0.0
        %588 = vmatprep.subr.mxu0 0.0
        %589 = vmatpush1.msra.mxu0 0.0
        %590 = vmatprep.subr.mxu0 0.0
        %591 = vmatpush1.msra.mxu0 0.0
        %592 = vmatprep.subr.mxu0 0.0
        %593 = vmatpush1.msra.mxu0 0.0
        %594 = vmatprep.subr.mxu0 0.0
        %595 = vmatpush1.msra.mxu0 0.0
        %596 = vmatprep.subr.mxu0 0.0
        %597 = vmatpush1.msra.mxu0 0.0
        %598 = vmatprep.subr.mxu0 0.0
        %599 = vmatpush1.msra.mxu0 0.0
        %600 = vmatprep.subr.mxu0 0.0
        %601 = vmatpush1.msra.mxu0 0.0
        %602 = vmatprep.subr.mxu0 0.0
        %603 = vmatpush1.msra.mxu0 0.0
        %604 = vmatprep.subr.mxu0 0.0
        %605 = vmatpush1.msra.mxu0 0.0
        %606 = vmatprep.subr.mxu0 0.0
        %607 = vmatpush1.msra.mxu0 0.0
        %608 = vmatprep.subr.mxu0 0.0
        %609 = vmatpush1.msra.mxu0 0.0
        %610 = vmatprep.subr.mxu0 0.0
        %611 = vmatpush1.msra.mxu0 0.0
        %612 = vmatprep.subr.mxu0 0.0
        %613 = vmatpush1.msra.mxu0 0.0
        %614 = vmatprep.subr.mxu0 0.0
        %615 = vmatpush1.msra.mxu0 0.0
        %616 = vmatprep.subr.mxu0 0.0
        %617 = vmatpush1.msra.mxu0 0.0
        %618 = vmatprep.subr.mxu0 0.0
        %619 = vmatpush1.msra.mxu0 0.0
        %620 = vmatprep.subr.mxu0 0.0
        %621 = vmatpush1.msra.mxu0 0.0
        %622 = vmatprep.mubr.f32.mxu0 0.0
        %623 = vmatmul.mubr.f32.gmra.mrb[0].mxu0 %v552
        %v624 = vpop.f32.mrb[0].mxu0
        %v625 = vadd.f32 0.0, %v624
        %v626 = vpop.f32.mrb[0].mxu0
        %v627 = vadd.f32 0.0, %v626
        %628 = vdwg.mxu0
        %v629 = vadd.f32 %v526, %v625
        %v630 = vadd.f32 %v527, %v627
        %s631 = scalar_lea.vmem %s1, 32
        %v632 = vld [vmem:[%s631] sm:$0xff]
        %633 = vrot.lane.b32.xlu0 %v223, 111
        %v634 = vpop.permute.xlu0 %633
        %635 = vrot.lane.b32.xlu0 %v245, 111
        %v636 = vpop.permute.xlu0 %635
        %637 = vrot.lane.b32.xlu0 %v224, 111
        %v638 = vpop.permute.xlu0 %637
        %vm639 = vcmask 908288
        %v640 = vsel %vm639, %v634, %v636
        %v641 = vsel %vm639, %v636, %v638
        %v643 = vsel %vm255, %v632, 0
        %v645 = vsel %vm259, %v640, 0
        %v647 = vsel %vm259, %v641, 0
        %649 = vmatprep.subr.mxu0 %v647
        %650 = vmatpush1.msra.mxu0 %v645
        %651 = vmatprep.subr.mxu0 0.0
        %652 = vmatpush1.msra.mxu0 0.0
        %653 = vmatprep.subr.mxu0 0.0
        %654 = vmatpush1.msra.mxu0 0.0
        %655 = vmatprep.subr.mxu0 0.0
        %656 = vmatpush1.msra.mxu0 0.0
        %657 = vmatprep.subr.mxu0 0.0
        %658 = vmatpush1.msra.mxu0 0.0
        %659 = vmatprep.subr.mxu0 0.0
        %660 = vmatpush1.msra.mxu0 0.0
        %661 = vmatprep.subr.mxu0 0.0
        %662 = vmatpush1.msra.mxu0 0.0
        %663 = vmatprep.subr.mxu0 0.0
        %664 = vmatpush1.msra.mxu0 0.0
        %665 = vmatprep.subr.mxu0 0.0
        %666 = vmatpush1.msra.mxu0 0.0
        %667 = vmatprep.subr.mxu0 0.0
        %668 = vmatpush1.msra.mxu0 0.0
        %669 = vmatprep.subr.mxu0 0.0
        %670 = vmatpush1.msra.mxu0 0.0
        %671 = vmatprep.subr.mxu0 0.0
        %672 = vmatpush1.msra.mxu0 0.0
        %673 = vmatprep.subr.mxu0 0.0
        %674 = vmatpush1.msra.mxu0 0.0
        %675 = vmatprep.subr.mxu0 0.0
        %676 = vmatpush1.msra.mxu0 0.0
        %677 = vmatprep.subr.mxu0 0.0
        %678 = vmatpush1.msra.mxu0 0.0
        %679 = vmatprep.subr.mxu0 0.0
        %680 = vmatpush1.msra.mxu0 0.0
        %681 = vmatprep.subr.mxu0 0.0
        %682 = vmatpush1.msra.mxu0 0.0
        %683 = vmatprep.subr.mxu0 0.0
        %684 = vmatpush1.msra.mxu0 0.0
        %685 = vmatprep.subr.mxu0 0.0
        %686 = vmatpush1.msra.mxu0 0.0
        %687 = vmatprep.subr.mxu0 0.0
        %688 = vmatpush1.msra.mxu0 0.0
        %689 = vmatprep.subr.mxu0 0.0
        %690 = vmatpush1.msra.mxu0 0.0
        %691 = vmatprep.subr.mxu0 0.0
        %692 = vmatpush1.msra.mxu0 0.0
        %693 = vmatprep.subr.mxu0 0.0
        %694 = vmatpush1.msra.mxu0 0.0
        %695 = vmatprep.subr.mxu0 0.0
        %696 = vmatpush1.msra.mxu0 0.0
        %697 = vmatprep.subr.mxu0 0.0
        %698 = vmatpush1.msra.mxu0 0.0
        %699 = vmatprep.subr.mxu0 0.0
        %700 = vmatpush1.msra.mxu0 0.0
        %701 = vmatprep.subr.mxu0 0.0
        %702 = vmatpush1.msra.mxu0 0.0
        %703 = vmatprep.subr.mxu0 0.0
        %704 = vmatpush1.msra.mxu0 0.0
        %705 = vmatprep.subr.mxu0 0.0
        %706 = vmatpush1.msra.mxu0 0.0
        %707 = vmatprep.subr.mxu0 0.0
        %708 = vmatpush1.msra.mxu0 0.0
        %709 = vmatprep.subr.mxu0 0.0
        %710 = vmatpush1.msra.mxu0 0.0
        %711 = vmatprep.subr.mxu0 0.0
        %712 = vmatpush1.msra.mxu0 0.0
        %713 = vmatprep.mubr.f32.mxu0 0.0
        %714 = vmatmul.mubr.f32.gmra.mrb[0].mxu0 %v643
        %v715 = vpop.f32.mrb[0].mxu0
        %v716 = vadd.f32 0.0, %v715
        %v717 = vpop.f32.mrb[0].mxu0
        %v718 = vadd.f32 0.0, %v717
        %719 = vdwg.mxu0
        %v720 = vadd.f32 %v629, %v716
        %v721 = vadd.f32 %v630, %v718
        %722 = vrot.lane.b32.xlu0 %v424, 18
        %v723 = vpop.permute.xlu0 %722
        %v724 = vrot.slane %v723, 4
        %vm725 = vcmask 146432
        %v726 = vsel %vm725, %v724, %v723
        %v729 = vmul.f32 %v223, %v726
        %v730 = vmul.f32 %v224, %v724
        %s731 = scalar_lea.vmem %s1, 40
        %v732 = vld [vmem:[%s731] sm:$0xff]
        %v735 = vcombine.high %v729, %v729
        %736 = vrot.lane.b32.xlu0 %v729, 110
        %v737 = vpop.permute.xlu0 %736
        %738 = vrot.lane.b32.xlu0 %v735, 110
        %v739 = vpop.permute.xlu0 %738
        %740 = vrot.lane.b32.xlu0 %v730, 110
        %v741 = vpop.permute.xlu0 %740
        %vm742 = vcmask 900096
        %v743 = vsel %vm742, %v737, %v739
        %v744 = vsel %vm742, %v739, %v741
        %v746 = vsel %vm255, %v732, 0
        %v748 = vsel %vm259, %v743, 0
        %v750 = vsel %vm259, %v744, 0
        %752 = vmatprep.subr.mxu0 %v750
        %753 = vmatpush1.msra.mxu0 %v748
        %754 = vmatprep.subr.mxu0 0.0
        %755 = vmatpush1.msra.mxu0 0.0
        %756 = vmatprep.subr.mxu0 0.0
        %757 = vmatpush1.msra.mxu0 0.0
        %758 = vmatprep.subr.mxu0 0.0
        %759 = vmatpush1.msra.mxu0 0.0
        %760 = vmatprep.subr.mxu0 0.0
        %761 = vmatpush1.msra.mxu0 0.0
        %762 = vmatprep.subr.mxu0 0.0
        %763 = vmatpush1.msra.mxu0 0.0
        %764 = vmatprep.subr.mxu0 0.0
        %765 = vmatpush1.msra.mxu0 0.0
        %766 = vmatprep.subr.mxu0 0.0
        %767 = vmatpush1.msra.mxu0 0.0
        %768 = vmatprep.subr.mxu0 0.0
        %769 = vmatpush1.msra.mxu0 0.0
        %770 = vmatprep.subr.mxu0 0.0
        %771 = vmatpush1.msra.mxu0 0.0
        %772 = vmatprep.subr.mxu0 0.0
        %773 = vmatpush1.msra.mxu0 0.0
        %774 = vmatprep.subr.mxu0 0.0
        %775 = vmatpush1.msra.mxu0 0.0
        %776 = vmatprep.subr.mxu0 0.0
        %777 = vmatpush1.msra.mxu0 0.0
        %778 = vmatprep.subr.mxu0 0.0
        %779 = vmatpush1.msra.mxu0 0.0
        %780 = vmatprep.subr.mxu0 0.0
        %781 = vmatpush1.msra.mxu0 0.0
        %782 = vmatprep.subr.mxu0 0.0
        %783 = vmatpush1.msra.mxu0 0.0
        %784 = vmatprep.subr.mxu0 0.0
        %785 = vmatpush1.msra.mxu0 0.0
        %786 = vmatprep.subr.mxu0 0.0
        %787 = vmatpush1.msra.mxu0 0.0
        %788 = vmatprep.subr.mxu0 0.0
        %789 = vmatpush1.msra.mxu0 0.0
        %790 = vmatprep.subr.mxu0 0.0
        %791 = vmatpush1.msra.mxu0 0.0
        %792 = vmatprep.subr.mxu0 0.0
        %793 = vmatpush1.msra.mxu0 0.0
        %794 = vmatprep.subr.mxu0 0.0
        %795 = vmatpush1.msra.mxu0 0.0
        %796 = vmatprep.subr.mxu0 0.0
        %797 = vmatpush1.msra.mxu0 0.0
        %798 = vmatprep.subr.mxu0 0.0
        %799 = vmatpush1.msra.mxu0 0.0
        %800 = vmatprep.subr.mxu0 0.0
        %801 = vmatpush1.msra.mxu0 0.0
        %802 = vmatprep.subr.mxu0 0.0
        %803 = vmatpush1.msra.mxu0 0.0
        %804 = vmatprep.subr.mxu0 0.0
        %805 = vmatpush1.msra.mxu0 0.0
        %806 = vmatprep.subr.mxu0 0.0
        %807 = vmatpush1.msra.mxu0 0.0
        %808 = vmatprep.subr.mxu0 0.0
        %809 = vmatpush1.msra.mxu0 0.0
        %810 = vmatprep.subr.mxu0 0.0
        %811 = vmatpush1.msra.mxu0 0.0
        %812 = vmatprep.subr.mxu0 0.0
        %813 = vmatpush1.msra.mxu0 0.0
        %814 = vmatprep.subr.mxu0 0.0
        %815 = vmatpush1.msra.mxu0 0.0
        %816 = vmatprep.mubr.f32.mxu0 0.0
        %817 = vmatmul.mubr.f32.gmra.mrb[0].mxu0 %v746
        %v818 = vpop.f32.mrb[0].mxu0
        %v819 = vadd.f32 0.0, %v818
        %v820 = vpop.f32.mrb[0].mxu0
        %v821 = vadd.f32 0.0, %v820
        %822 = vdwg.mxu0
        %v823 = vadd.f32 %v720, %v819
        %v824 = vadd.f32 %v721, %v821
        %825 = vrot.lane.b32.xlu0 %v237, 32
        %v826 = vpop.permute.xlu0 %825
        %v827 = vrot.slane %v826, 4
        %vm828 = vcmask 261120
        %v829 = vsel %vm828, %v827, %v826
        %v832 = vmul.f32 %v223, %v829
        %v833 = vmul.f32 %v224, %v827
        %s834 = scalar_lea.vmem %s1, 48
        %v835 = vld [vmem:[%s834] sm:$0xff]
        %v838 = vcombine.high %v832, %v832
        %839 = vrot.lane.b32.xlu0 %v832, 96
        %v840 = vpop.permute.xlu0 %839
        %841 = vrot.lane.b32.xlu0 %v838, 96
        %v842 = vpop.permute.xlu0 %841
        %843 = vrot.lane.b32.xlu0 %v833, 96
        %v844 = vpop.permute.xlu0 %843
        %vm845 = vcmask 785408
        %v846 = vsel %vm845, %v840, %v842
        %v847 = vsel %vm845, %v842, %v844
        %v849 = vsel %vm255, %v835, 0
        %v851 = vsel %vm259, %v846, 0
        %v853 = vsel %vm259, %v847, 0
        %855 = vmatprep.subr.mxu0 %v853
        %856 = vmatpush1.msra.mxu0 %v851
        %857 = vmatprep.subr.mxu0 0.0
        %858 = vmatpush1.msra.mxu0 0.0
        %859 = vmatprep.subr.mxu0 0.0
        %860 = vmatpush1.msra.mxu0 0.0
        %861 = vmatprep.subr.mxu0 0.0
        %862 = vmatpush1.msra.mxu0 0.0
        %863 = vmatprep.subr.mxu0 0.0
        %864 = vmatpush1.msra.mxu0 0.0
        %865 = vmatprep.subr.mxu0 0.0
        %866 = vmatpush1.msra.mxu0 0.0
        %867 = vmatprep.subr.mxu0 0.0
        %868 = vmatpush1.msra.mxu0 0.0
        %869 = vmatprep.subr.mxu0 0.0
        %870 = vmatpush1.msra.mxu0 0.0
        %871 = vmatprep.subr.mxu0 0.0
        %872 = vmatpush1.msra.mxu0 0.0
        %873 = vmatprep.subr.mxu0 0.0
        %874 = vmatpush1.msra.mxu0 0.0
        %875 = vmatprep.subr.mxu0 0.0
        %876 = vmatpush1.msra.mxu0 0.0
        %877 = vmatprep.subr.mxu0 0.0
        %878 = vmatpush1.msra.mxu0 0.0
        %879 = vmatprep.subr.mxu0 0.0
        %880 = vmatpush1.msra.mxu0 0.0
        %881 = vmatprep.subr.mxu0 0.0
        %882 = vmatpush1.msra.mxu0 0.0
        %883 = vmatprep.subr.mxu0 0.0
        %884 = vmatpush1.msra.mxu0 0.0
        %885 = vmatprep.subr.mxu0 0.0
        %886 = vmatpush1.msra.mxu0 0.0
        %887 = vmatprep.subr.mxu0 0.0
        %888 = vmatpush1.msra.mxu0 0.0
        %889 = vmatprep.subr.mxu0 0.0
        %890 = vmatpush1.msra.mxu0 0.0
        %891 = vmatprep.subr.mxu0 0.0
        %892 = vmatpush1.msra.mxu0 0.0
        %893 = vmatprep.subr.mxu0 0.0
        %894 = vmatpush1.msra.mxu0 0.0
        %895 = vmatprep.subr.mxu0 0.0
        %896 = vmatpush1.msra.mxu0 0.0
        %897 = vmatprep.subr.mxu0 0.0
        %898 = vmatpush1.msra.mxu0 0.0
        %899 = vmatprep.subr.mxu0 0.0
        %900 = vmatpush1.msra.mxu0 0.0
        %901 = vmatprep.subr.mxu0 0.0
        %902 = vmatpush1.msra.mxu0 0.0
        %903 = vmatprep.subr.mxu0 0.0
        %904 = vmatpush1.msra.mxu0 0.0
        %905 = vmatprep.subr.mxu0 0.0
        %906 = vmatpush1.msra.mxu0 0.0
        %907 = vmatprep.subr.mxu0 0.0
        %908 = vmatpush1.msra.mxu0 0.0
        %909 = vmatprep.subr.mxu0 0.0
        %910 = vmatpush1.msra.mxu0 0.0
        %911 = vmatprep.subr.mxu0 0.0
        %912 = vmatpush1.msra.mxu0 0.0
        %913 = vmatprep.subr.mxu0 0.0
        %914 = vmatpush1.msra.mxu0 0.0
        %915 = vmatprep.subr.mxu0 0.0
        %916 = vmatpush1.msra.mxu0 0.0
        %917 = vmatprep.subr.mxu0 0.0
        %918 = vmatpush1.msra.mxu0 0.0
        %919 = vmatprep.mubr.f32.mxu0 0.0
        %920 = vmatmul.mubr.f32.gmra.mrb[0].mxu0 %v849
        %v921 = vpop.f32.mrb[0].mxu0
        %v922 = vadd.f32 0.0, %v921
        %v923 = vpop.f32.mrb[0].mxu0
        %v924 = vadd.f32 0.0, %v923
        %925 = vdwg.mxu0
        %v926 = vadd.f32 %v823, %v922
        %v927 = vadd.f32 %v824, %v924
        %s928 = scalar_lea.vmem %s1, 56
        %v929 = vld [vmem:[%s928] sm:$0xff]
        %930 = vrot.lane.b32.xlu0 %v223, 95
        %v931 = vpop.permute.xlu0 %930
        %932 = vrot.lane.b32.xlu0 %v245, 95
        %v933 = vpop.permute.xlu0 %932
        %934 = vrot.lane.b32.xlu0 %v224, 95
        %v935 = vpop.permute.xlu0 %934
        %vm936 = vcmask 777216
        %v937 = vsel %vm936, %v931, %v933
        %v938 = vsel %vm936, %v933, %v935
        %v940 = vsel %vm255, %v929, 0
        %v942 = vsel %vm259, %v937, 0
        %v944 = vsel %vm259, %v938, 0
        %946 = vmatprep.subr.mxu0 %v944
        %947 = vmatpush1.msra.mxu0 %v942
        %948 = vmatprep.subr.mxu0 0.0
        %949 = vmatpush1.msra.mxu0 0.0
        %950 = vmatprep.subr.mxu0 0.0
        %951 = vmatpush1.msra.mxu0 0.0
        %952 = vmatprep.subr.mxu0 0.0
        %953 = vmatpush1.msra.mxu0 0.0
        %954 = vmatprep.subr.mxu0 0.0
        %955 = vmatpush1.msra.mxu0 0.0
        %956 = vmatprep.subr.mxu0 0.0
        %957 = vmatpush1.msra.mxu0 0.0
        %958 = vmatprep.subr.mxu0 0.0
        %959 = vmatpush1.msra.mxu0 0.0
        %960 = vmatprep.subr.mxu0 0.0
        %961 = vmatpush1.msra.mxu0 0.0
        %962 = vmatprep.subr.mxu0 0.0
        %963 = vmatpush1.msra.mxu0 0.0
        %964 = vmatprep.subr.mxu0 0.0
        %965 = vmatpush1.msra.mxu0 0.0
        %966 = vmatprep.subr.mxu0 0.0
        %967 = vmatpush1.msra.mxu0 0.0
        %968 = vmatprep.subr.mxu0 0.0
        %969 = vmatpush1.msra.mxu0 0.0
        %970 = vmatprep.subr.mxu0 0.0
        %971 = vmatpush1.msra.mxu0 0.0
        %972 = vmatprep.subr.mxu0 0.0
        %973 = vmatpush1.msra.mxu0 0.0
        %974 = vmatprep.subr.mxu0 0.0
        %975 = vmatpush1.msra.mxu0 0.0
        %976 = vmatprep.subr.mxu0 0.0
        %977 = vmatpush1.msra.mxu0 0.0
        %978 = vmatprep.subr.mxu0 0.0
        %979 = vmatpush1.msra.mxu0 0.0
        %980 = vmatprep.subr.mxu0 0.0
        %981 = vmatpush1.msra.mxu0 0.0
        %982 = vmatprep.subr.mxu0 0.0
        %983 = vmatpush1.msra.mxu0 0.0
        %984 = vmatprep.subr.mxu0 0.0
        %985 = vmatpush1.msra.mxu0 0.0
        %986 = vmatprep.subr.mxu0 0.0
        %987 = vmatpush1.msra.mxu0 0.0
        %988 = vmatprep.subr.mxu0 0.0
        %989 = vmatpush1.msra.mxu0 0.0
        %990 = vmatprep.subr.mxu0 0.0
        %991 = vmatpush1.msra.mxu0 0.0
        %992 = vmatprep.subr.mxu0 0.0
        %993 = vmatpush1.msra.mxu0 0.0
        %994 = vmatprep.subr.mxu0 0.0
        %995 = vmatpush1.msra.mxu0 0.0
        %996 = vmatprep.subr.mxu0 0.0
        %997 = vmatpush1.msra.mxu0 0.0
        %998 = vmatprep.subr.mxu0 0.0
        %999 = vmatpush1.msra.mxu0 0.0
        %1000 = vmatprep.subr.mxu0 0.0
        %1001 = vmatpush1.msra.mxu0 0.0
        %1002 = vmatprep.subr.mxu0 0.0
        %1003 = vmatpush1.msra.mxu0 0.0
        %1004 = vmatprep.subr.mxu0 0.0
        %1005 = vmatpush1.msra.mxu0 0.0
        %1006 = vmatprep.subr.mxu0 0.0
        %1007 = vmatpush1.msra.mxu0 0.0
        %1008 = vmatprep.subr.mxu0 0.0
        %1009 = vmatpush1.msra.mxu0 0.0
        %1010 = vmatprep.mubr.f32.mxu0 0.0
        %1011 = vmatmul.mubr.f32.gmra.mrb[0].mxu0 %v940
        %v1012 = vpop.f32.mrb[0].mxu0
        %v1013 = vadd.f32 0.0, %v1012
        %v1014 = vpop.f32.mrb[0].mxu0
        %v1015 = vadd.f32 0.0, %v1014
        %1016 = vdwg.mxu0
        %v1017 = vadd.f32 %v926, %v1013
        %v1018 = vadd.f32 %v927, %v1015
        %1019 = vrot.lane.b32.xlu0 %v424, 34
        %v1020 = vpop.permute.xlu0 %1019
        %v1021 = vrot.slane %v1020, 4
        %vm1022 = vcmask 277504
        %v1023 = vsel %vm1022, %v1021, %v1020
        %v1026 = vmul.f32 %v223, %v1023
        %v1027 = vmul.f32 %v224, %v1021
        %s1028 = scalar_lea.vmem %s1, 64
        %v1029 = vld [vmem:[%s1028] sm:$0xff]
        %v1032 = vcombine.high %v1026, %v1026
        %1033 = vrot.lane.b32.xlu0 %v1026, 94
        %v1034 = vpop.permute.xlu0 %1033
        %1035 = vrot.lane.b32.xlu0 %v1032, 94
        %v1036 = vpop.permute.xlu0 %1035
        %1037 = vrot.lane.b32.xlu0 %v1027, 94
        %v1038 = vpop.permute.xlu0 %1037
        %vm1039 = vcmask 769024
        %v1040 = vsel %vm1039, %v1034, %v1036
        %v1041 = vsel %vm1039, %v1036, %v1038
        %v1043 = vsel %vm255, %v1029, 0
        %v1045 = vsel %vm259, %v1040, 0
        %v1047 = vsel %vm259, %v1041, 0
        %1049 = vmatprep.subr.mxu0 %v1047
        %1050 = vmatpush1.msra.mxu0 %v1045
        %1051 = vmatprep.subr.mxu0 0.0
        %1052 = vmatpush1.msra.mxu0 0.0
        %1053 = vmatprep.subr.mxu0 0.0
        %1054 = vmatpush1.msra.mxu0 0.0
        %1055 = vmatprep.subr.mxu0 0.0
        %1056 = vmatpush1.msra.mxu0 0.0
        %1057 = vmatprep.subr.mxu0 0.0
        %1058 = vmatpush1.msra.mxu0 0.0
        %1059 = vmatprep.subr.mxu0 0.0
        %1060 = vmatpush1.msra.mxu0 0.0
        %1061 = vmatprep.subr.mxu0 0.0
        %1062 = vmatpush1.msra.mxu0 0.0
        %1063 = vmatprep.subr.mxu0 0.0
        %1064 = vmatpush1.msra.mxu0 0.0
        %1065 = vmatprep.subr.mxu0 0.0
        %1066 = vmatpush1.msra.mxu0 0.0
        %1067 = vmatprep.subr.mxu0 0.0
        %1068 = vmatpush1.msra.mxu0 0.0
        %1069 = vmatprep.subr.mxu0 0.0
        %1070 = vmatpush1.msra.mxu0 0.0
        %1071 = vmatprep.subr.mxu0 0.0
        %1072 = vmatpush1.msra.mxu0 0.0
        %1073 = vmatprep.subr.mxu0 0.0
        %1074 = vmatpush1.msra.mxu0 0.0
        %1075 = vmatprep.subr.mxu0 0.0
        %1076 = vmatpush1.msra.mxu0 0.0
        %1077 = vmatprep.subr.mxu0 0.0
        %1078 = vmatpush1.msra.mxu0 0.0
        %1079 = vmatprep.subr.mxu0 0.0
        %1080 = vmatpush1.msra.mxu0 0.0
        %1081 = vmatprep.subr.mxu0 0.0
        %1082 = vmatpush1.msra.mxu0 0.0
        %1083 = vmatprep.subr.mxu0 0.0
        %1084 = vmatpush1.msra.mxu0 0.0
        %1085 = vmatprep.subr.mxu0 0.0
        %1086 = vmatpush1.msra.mxu0 0.0
        %1087 = vmatprep.subr.mxu0 0.0
        %1088 = vmatpush1.msra.mxu0 0.0
        %1089 = vmatprep.subr.mxu0 0.0
        %1090 = vmatpush1.msra.mxu0 0.0
        %1091 = vmatprep.subr.mxu0 0.0
        %1092 = vmatpush1.msra.mxu0 0.0
        %1093 = vmatprep.subr.mxu0 0.0
        %1094 = vmatpush1.msra.mxu0 0.0
        %1095 = vmatprep.subr.mxu0 0.0
        %1096 = vmatpush1.msra.mxu0 0.0
        %1097 = vmatprep.subr.mxu0 0.0
        %1098 = vmatpush1.msra.mxu0 0.0
        %1099 = vmatprep.subr.mxu0 0.0
        %1100 = vmatpush1.msra.mxu0 0.0
        %1101 = vmatprep.subr.mxu0 0.0
        %1102 = vmatpush1.msra.mxu0 0.0
        %1103 = vmatprep.subr.mxu0 0.0
        %1104 = vmatpush1.msra.mxu0 0.0
        %1105 = vmatprep.subr.mxu0 0.0
        %1106 = vmatpush1.msra.mxu0 0.0
        %1107 = vmatprep.subr.mxu0 0.0
        %1108 = vmatpush1.msra.mxu0 0.0
        %1109 = vmatprep.subr.mxu0 0.0
        %1110 = vmatpush1.msra.mxu0 0.0
        %1111 = vmatprep.subr.mxu0 0.0
        %1112 = vmatpush1.msra.mxu0 0.0
        %1113 = vmatprep.mubr.f32.mxu0 0.0
        %1114 = vmatmul.mubr.f32.gmra.mrb[0].mxu0 %v1043
        %v1115 = vpop.f32.mrb[0].mxu0
        %v1116 = vadd.f32 0.0, %v1115
        %v1117 = vpop.f32.mrb[0].mxu0
        %v1118 = vadd.f32 0.0, %v1117
        %1119 = vdwg.mxu0
        %v1120 = vadd.f32 %v1017, %v1116
        %v1121 = vadd.f32 %v1018, %v1118
        %v1122 = vld [vmem:[%s2] sm:$0xff]
        %1124 = vset.pattern.permute.xlu0 0
        %1125 = vperm.xlu0 %1124, %v1122
        %v1126 = vpop.permute.xlu0 %1125
        %v1128 = vadd.f32 %v1120, %v1126
        %v1129 = vadd.f32 %v1121, %v1126
        %v1130 = vmax.f32 %v1128, 0.0
        %v1131 = vmax.f32 %v1129, 0.0
        %v1132 = vld [vmem:[%s4] sm:$0x3]
        %v1133 = vld [vmem:[%s4 + $0x2] sm:$0x3]
        %v1134 = vld [vmem:[%s4 + $0x4] sm:$0x3]
        %v1135 = vld [vmem:[%s4 + $0x6] sm:$0x3]
        %v1136 = vld [vmem:[%s4 + $0x8] sm:$0x3]
        %v1142 = vlaneseq
        %v1143 = vshrl.u32 %v1142, 7
        %v1144 = vsub.s32 0, %v1143
        %v1145 = vrot.slane %v1132, %v1144
        %v1146 = vlaneseq
        %v1147 = vshrl.u32 %v1146, 7
        %v1148 = vsub.s32 1, %v1147
        %v1149 = vrot.slane %v1132, %v1148
        %v1150 = vlaneseq
        %v1151 = vshrl.u32 %v1150, 7
        %v1152 = vsub.s32 0, %v1151
        %v1153 = vrot.slane %v1133, %v1152
        %v1154 = vlaneseq
        %v1155 = vshrl.u32 %v1154, 7
        %v1156 = vsub.s32 1, %v1155
        %v1157 = vrot.slane %v1133, %v1156
        %v1158 = vlaneseq
        %v1159 = vshrl.u32 %v1158, 7
        %v1160 = vsub.s32 0, %v1159
        %v1161 = vrot.slane %v1134, %v1160
        %v1162 = vlaneseq
        %v1163 = vshrl.u32 %v1162, 7
        %v1164 = vsub.s32 1, %v1163
        %v1165 = vrot.slane %v1134, %v1164
        %v1166 = vlaneseq
        %v1167 = vshrl.u32 %v1166, 7
        %v1168 = vsub.s32 0, %v1167
        %v1169 = vrot.slane %v1135, %v1168
        %v1170 = vlaneseq
        %v1171 = vshrl.u32 %v1170, 7
        %v1172 = vsub.s32 1, %v1171
        %v1173 = vrot.slane %v1135, %v1172
        %v1174 = vlaneseq
        %v1175 = vshrl.u32 %v1174, 7
        %v1176 = vsub.s32 0, %v1175
        %v1177 = vrot.slane %v1136, %v1176
        %v1178 = vlaneseq
        %v1179 = vshrl.u32 %v1178, 7
        %v1180 = vsub.s32 1, %v1179
        %v1181 = vrot.slane %v1136, %v1180
        %v1192 = vmul.f32 %v1145, %v1130
        %v1193 = vmul.f32 %v1149, %v1131
        %v1194 = vmul.f32 %v1153, %v1130
        %v1195 = vmul.f32 %v1157, %v1131
        %v1196 = vmul.f32 %v1161, %v1130
        %v1197 = vmul.f32 %v1165, %v1131
        %v1198 = vmul.f32 %v1169, %v1130
        %v1199 = vmul.f32 %v1173, %v1131
        %v1200 = vmul.f32 %v1177, %v1130
        %v1201 = vmul.f32 %v1181, %v1131
        %1202 = vst [vmem:[%s217] sm:$0xff] %v1192
        %1203 = vst [vmem:[%s217 + $0x8] sm:$0xff] %v1193
        %1204 = vst [vmem:[%s217 + $0x10] sm:$0xff] %v1194
        %1205 = vst [vmem:[%s217 + $0x18] sm:$0xff] %v1195
        %1206 = vst [vmem:[%s217 + $0x20] sm:$0xff] %v1196
        %1207 = vst [vmem:[%s217 + $0x28] sm:$0xff] %v1197
        %1208 = vst [vmem:[%s217 + $0x30] sm:$0xff] %v1198
        %1209 = vst [vmem:[%s217 + $0x38] sm:$0xff] %v1199
        %1210 = vst [vmem:[%s217 + $0x40] sm:$0xff] %v1200
        %1211 = vst [vmem:[%s217 + $0x48] sm:$0xff] %v1201
        %s1212 = sand.u32 %s137, 1
        %s1213 = scalar_lea.sflag [#allocation3], %s1212
        %s1214 = sand.u32 %s137, 1
        %s1215 = smul.addr %s1214, 80
        %s1216 = scalar_lea.vmem [#allocation2], %s1215
        // Predicated region
        $region41: #{tpu_custom_call.1} parent=39 // pred_check
          %p1217 = pneg %p147
        $region42: #{tpu_custom_call.1} parent=39 // pred_check_branch
          %1219 = sbr.rel (%p1217) target = $region44
        $region43: #{tpu_custom_call.1} parent=39 // pred_region
          %s1221 = ssub.s32 1280, 1280
          %1222 = vsyncadd %s1213, %s1221
          %s1223 = smul.addr %s19, 10
          %s1224 = smul.addr %s1223, 128
          %s1225 = scalar_lea.hbm %s5, %s1224
          %s1226 = sshll.u32 %s1216, 4
          %s1227 = int_to_ptr.vmem [resolvable:$true] %s1226
          %1232 = dma.vmem_to_hbm [thread:$0]  %s1227, 1280, %s1225, %s1213, 256, 256, 16
        $region44: #{tpu_custom_call.1} parent=39 // pred_fallthru
          _
      $region40: #{tpu_custom_call.1} parent=5 // pred_fallthru
        _
      %p1233 = scmp.le.s32.totalorder 2, %s14
      // Predicated region
      $region45: #{tpu_custom_call.1} parent=5 // pred_check
        %p1234 = pneg %p1233
      $region46: #{tpu_custom_call.1} parent=5 // pred_check_branch
        %1236 = sbr.rel (%p1234) target = $region48
      $region47: #{tpu_custom_call.1} parent=5 // pred_region
        %s1237 = ssub.s32 %s14, 2
        // Predicated region
        $region49: #{tpu_custom_call.1} parent=47 // pred_check
          %p1238 = pneg %p153
        $region50: #{tpu_custom_call.1} parent=47 // pred_check_branch
          %1240 = sbr.rel (%p1238) target = $region52
        $region51: #{tpu_custom_call.1} parent=47 // pred_region
          %s1241 = sand.u32 %s138, 1
          %s1242 = scalar_lea.sflag [#allocation3], %s1241
          %s1243 = sand.u32 %s138, 1
          %s1244 = smul.addr %s1243, 80
          %s1245 = scalar_lea.vmem [#allocation2], %s1244
          %1246 = dma.done %s1242, 1280
        $region52: #{tpu_custom_call.1} parent=47 // pred_fallthru
          _
      $region48: #{tpu_custom_call.1} parent=5 // pred_fallthru
        _
    $region6: #{tpu_custom_call.1} parent=1 // loop_footer
      %s18 = sadd.s32 1, %s14
    $region7: #{tpu_custom_call.1} parent=1 // loop_footer_branch
      %13 = sbr.rel target = $region3
    $region8: #{tpu_custom_call.1} parent=1 // loop_exit
      _
    %1247 = vsyncpa [#allocation3], 1
    %s1248 = scalar_lea.sflag [#allocation3], 1
    %1249 = vsyncpa %s1248, 1

</llo_original>
